<compile_context>
chip_gen: v7x
topology: tpu7x:2x2x1
jax: 0.10.0
libtpu: 0.0.40
codegen_flags: <defaults>
</compile_context>

<pallas_src>
import functools

import jax
import jax.numpy as jnp
from jax.experimental import pallas as pl
from jax.experimental.pallas import tpu as pltpu

D_IN = 768    # data2vec hidden size (Audio_Encoder.input_dim)
D_FEAT = 512  # projector output == Audio_Classifier_reg input_dim
D_OUT = 1     # regression head output


def _seq_sum_kernel(x_ref, sum_ref, *, t_total, t_eff, needs_mask):
    """Streaming sum of hidden states over sequence tiles for one batch row.

    Grid: (batch [parallel], seq-tile [arbitrary / reduction]).
      x_ref   : (1, t_eff, 768) block of hidden states, input dtype (f32 or bf16)
      sum_ref : (1, 1, 768) f32 output block, resident across the reduction axis
    """
    k = pl.program_id(1)

    @pl.when(k == 0)
    def _init():
        sum_ref[...] = jnp.zeros_like(sum_ref)

    x = x_ref[...]                                            # (1, t_eff, 768)
    if needs_mask:
        # The last tile along the sequence is partially out-of-bounds in HBM;
        # Pallas only DMAs the valid region, the rest of the VMEM buffer is
        # stale and MUST be masked out (cannot be assumed zero).
        limit = t_total - k * t_eff                           # rows valid in this tile
        t_idx = jax.lax.broadcasted_iota(jnp.int32, x.shape, 1)
        x = jnp.where(t_idx < limit, x, jnp.zeros_like(x))
    # f32 accumulation without materializing a widened copy of the whole block.
    sum_ref[...] += jnp.sum(x, axis=1, keepdims=True, dtype=jnp.float32)


@functools.partial(jax.jit, static_argnames=("t_tile",))
def audio_encoder_single_cls(hidden_states, labels, wp, bp, wc, bc, *, t_tile=1024):
    """hidden_states: [B, T, 768] (f32 or bf16), labels: [B]
    -> (reg_result [B, 1] f32, reg_loss scalar f32)."""
    B, T, D = hidden_states.shape
    assert D == D_IN
    elt = jnp.dtype(hidden_states.dtype).itemsize

    # ---- sequence tiling: second-minor block dim must be a multiple of 8 or the
    # full extent. Block bytes are per batch row, so VMEM use is independent of B.
    if T <= t_tile:
        t_eff = T
    else:
        t_eff = max(8, (t_tile // 8) * 8)
    num_t = pl.cdiv(T, t_eff)
    needs_mask = (T % t_eff) != 0

    cost = pl.CostEstimate(
        flops=B * T * D,                                      # the streaming sum
        transcendentals=0,
        bytes_accessed=B * T * D * elt + B * D_IN * 4)

    sums = pl.pallas_call(
        functools.partial(_seq_sum_kernel,
                          t_total=T, t_eff=t_eff, needs_mask=needs_mask),
        out_shape=jax.ShapeDtypeStruct((B, 1, D_IN), jnp.float32),
        grid_spec=pltpu.PrefetchScalarGridSpec(
            num_scalar_prefetch=0,
            grid=(B, num_t),
            in_specs=[pl.BlockSpec((1, t_eff, D_IN), lambda b, k: (b, k, 0))],
            out_specs=pl.BlockSpec((1, 1, D_IN), lambda b, k: (b, 0, 0)),
        ),
        compiler_params=pltpu.CompilerParams(
            dimension_semantics=("parallel", "arbitrary")),   # batch x seq-reduction
        cost_estimate=cost,
    )(hidden_states)

    # ---- folded linear head + mean + MSE loss: tiny XLA ops on (B, 768) ----
    f32 = jnp.float32
    mean_x = sums.reshape(B, D_IN) * (1.0 / f32(T))           # (B, 768)
    wc32 = wc.astype(f32)
    w_eff = wp.astype(f32) @ wc32                             # (768, 1)  = Wp @ Wc
    b_eff = bp.astype(f32) @ wc32 + bc.astype(f32)            # (1,)      = bp @ Wc + bc
    reg = mean_x @ w_eff + b_eff                              # (B, 1)
    # nn.MSELoss default reduction='mean' over the B elements
    loss = jnp.mean((reg.reshape(-1) - labels.astype(f32)) ** 2)
    return reg, loss


def _init_params(key):
    """Deterministic param init (PyTorch-Linear-style uniform +-1/sqrt(fan_in))."""
    k1, k2, k3, k4 = jax.random.split(key, 4)
    lim_p = 1.0 / jnp.sqrt(jnp.float32(D_IN))
    lim_c = 1.0 / jnp.sqrt(jnp.float32(D_FEAT))
    wp = jax.random.uniform(k1, (D_IN, D_FEAT), jnp.float32, -lim_p, lim_p)
    bp = jax.random.uniform(k2, (D_FEAT,),      jnp.float32, -lim_p, lim_p)
    wc = jax.random.uniform(k3, (D_FEAT, D_OUT), jnp.float32, -lim_c, lim_c)
    bc = jax.random.uniform(k4, (D_OUT,),        jnp.float32, -lim_c, lim_c)
    return wp, bp, wc, bc


def _reference(hidden_states, labels, wp, bp, wc, bc):
    """Pure-JAX reference of the single_cls branch (Projector -> classifier -> mean -> MSE)."""
    hs = hidden_states.astype(jnp.float32)
    feat = jnp.einsum("btd,dh->bth", hs, wp) + bp
    logits = jnp.einsum("bth,ho->bto", feat, wc) + bc
    reg = jnp.mean(logits, axis=1)                            # (B, 1)
    loss = jnp.mean((reg.reshape(-1) - labels.astype(jnp.float32)) ** 2)
    return reg, loss


if __name__ == "__main__":
    key = jax.random.PRNGKey(0)
    kx1, kl1, kp, kx2, kl2 = jax.random.split(key, 5)

    wp, bp, wc, bc = _init_params(kp)
    B = 2

    # Case 1: tiny f32 sequence (single tile, block == full seq extent, no mask).
    T1 = 8
    hs1 = jax.random.normal(kx1, (B, T1, D_IN), jnp.float32)  # stand-in for data2vec last_hidden_state
    lab1 = jax.random.normal(kl1, (B,), jnp.float32)
    reg1, loss1 = audio_encoder_single_cls(hs1, lab1, wp, bp, wc, bc)
    jax.block_until_ready((reg1, loss1))
    reg1_ref, loss1_ref = _reference(hs1, lab1, wp, bp, wc, bc)
    assert reg1.shape == (B, 1) and loss1.shape == ()
    assert jnp.allclose(reg1, reg1_ref, atol=2e-4, rtol=2e-4)
    assert jnp.allclose(loss1, loss1_ref, atol=2e-4, rtol=2e-4)

    # Case 2: longer ragged bf16 sequence (exercises tiling + in-kernel tail mask,
    # bf16 streaming with f32 accumulation).
    T2 = 200
    hs2 = jax.random.normal(kx2, (B, T2, D_IN), jnp.float32).astype(jnp.bfloat16)
    lab2 = jax.random.normal(kl2, (B,), jnp.float32)
    reg2, loss2 = audio_encoder_single_cls(hs2, lab2, wp, bp, wc, bc, t_tile=64)
    jax.block_until_ready((reg2, loss2))
    reg2_ref, loss2_ref = _reference(hs2, lab2, wp, bp, wc, bc)
    assert jnp.allclose(reg2, reg2_ref, atol=1e-3, rtol=1e-3)
    assert jnp.allclose(loss2, loss2_ref, atol=1e-3, rtol=1e-3)

    print("KERNEL_OK")
</pallas_src>

<mosaic_0001>
module attributes {stable_mosaic.version = 11 : i64} {
  func.func @_seq_sum_kernel(%arg0: i32, %arg1: i32, %arg2: memref<1x8x768xf32, #tpu.memory_space<vmem>>, %arg3: memref<1x1x768xf32, #tpu.memory_space<vmem>>) attributes {dimension_semantics = [#tpu.dimension_semantics<parallel>, #tpu.dimension_semantics<arbitrary>], iteration_bounds = array<i64: 2, 1>, scalar_prefetch = 0 : i64, scratch_operands = 0 : i64, tpu.core_type = #tpu.core_type<tc>, window_params = [{transform_indices = @transform_0, window_bounds = array<i64: 1, 8, 768>}, {transform_indices = @transform_1, window_bounds = array<i64: 1, 1, 768>}]} {
    %c0_i32 = arith.constant 0 : i32
    %0 = arith.cmpi eq, %arg1, %c0_i32 : i32
    %1 = arith.extui %0 : i1 to i32
    %c0_i32_0 = arith.constant 0 : i32
    %2 = arith.cmpi ne, %1, %c0_i32_0 : i32
    scf.if %2 {
      %cst_9 = arith.constant 0.000000e+00 : f32
      %9 = vector.broadcast %cst_9 : f32 to vector<1x1x768xf32>
      %c0_10 = arith.constant 0 : index
      %c0_11 = arith.constant 0 : index
      %c0_12 = arith.constant 0 : index
      %10 = vector.load %arg3[%c0_10, %c0_11, %c0_12] : memref<1x1x768xf32, #tpu.memory_space<vmem>>, vector<1x1x768xf32>
      tpu.vector_store %arg3[%c0_10, %c0_11, %c0_12], %9 {strides = array<i32>} : memref<1x1x768xf32, #tpu.memory_space<vmem>>, vector<1x1x768xf32>,
    } else {
    }
    %c0 = arith.constant 0 : index
    %c0_1 = arith.constant 0 : index
    %c0_2 = arith.constant 0 : index
    %3 = vector.load %arg2[%c0, %c0_1, %c0_2] : memref<1x8x768xf32, #tpu.memory_space<vmem>>, vector<1x8x768xf32>
    %c0_3 = arith.constant 0 : index
    %c0_4 = arith.constant 0 : index
    %c0_5 = arith.constant 0 : index
    %4 = vector.load %arg3[%c0_3, %c0_4, %c0_5] : memref<1x1x768xf32, #tpu.memory_space<vmem>>, vector<1x1x768xf32>
    %cst = arith.constant dense<0.000000e+00> : vector<1x768xf32>
    %5 = vector.multi_reduction <add>, %3, %cst [1] : vector<1x8x768xf32> to vector<1x768xf32>
    %6 = vector.shape_cast %5 : vector<1x768xf32> to vector<1x1x768xf32>
    %7 = arith.addf %4, %6 : vector<1x1x768xf32>
    %c0_6 = arith.constant 0 : index
    %c0_7 = arith.constant 0 : index
    %c0_8 = arith.constant 0 : index
    %8 = vector.load %arg3[%c0_6, %c0_7, %c0_8] : memref<1x1x768xf32, #tpu.memory_space<vmem>>, vector<1x1x768xf32>
    tpu.vector_store %arg3[%c0_6, %c0_7, %c0_8], %7 {strides = array<i32>} : memref<1x1x768xf32, #tpu.memory_space<vmem>>, vector<1x1x768xf32>,
    return
  }
  func.func @transform_0(%arg0: i32, %arg1: i32) -> (i32, i32, i32) {
    %c0_i32 = arith.constant 0 : i32
    %c0_i32_0 = arith.constant 0 : i32
    return %arg0, %arg1, %c0_i32 : i32, i32, i32
  }
  func.func @transform_1(%arg0: i32, %arg1: i32) -> (i32, i32, i32) {
    %c0_i32 = arith.constant 0 : i32
    %c0_i32_0 = arith.constant 0 : i32
    %c0_i32_1 = arith.constant 0 : i32
    return %arg0, %c0_i32, %c0_i32_0 : i32, i32, i32
  }
}

</mosaic_0001>

<llo_original>
// kernel: audio_encoder_single_cls.1
$region0: #{audio_encoder_single_cls.1}
  #allocation0 [shape = 'u32[]', space=smem, size = 0x4, offset = 0x4, fixed_abs, tag = 'smem constant byte address 0x4 - core index']
  #allocation1 [shape = 'u32[144,128]{1,0:T(1,128)}', space=vmem, size = 0x12000, scoped, tag = 'internal scratch']
  %s0 = inlined_call_operand.hbm [shape: f32[2,8,768], index: 0, kind: input, shape index: {}]
  %s1 = inlined_call_operand.vmem [shape: f32[2,1,768], index: 1, kind: output, shape index: {}]
  %s2 = sld [smem:[#allocation0]]
  $region45: #{audio_encoder_single_cls.1} parent=0
    _
  %s4 = ssub.s32 1, %s2
  %s5 = scalar_select 0, %s4, %s2
  $region1: #{audio_encoder_single_cls.1} parent=0
    #allocation2 [shape = 'u8[49152]{0}', space=vmem, size = 0xc000, scoped, tag = 'input window, operand 0']
    #allocation3 [shape = 's32[2]{0}', space=sflag, size = 0x8, scoped, tag = 'scoped memory for audio_encoder_single_cls.1']
    %6 = vsyncpa [#allocation3], 0
    %s7 = scalar_lea.sflag [#allocation3], 1
    %8 = vsyncpa %s7, 0
    loop: start=0, step=1, limit=4
    $region2: #{audio_encoder_single_cls.1} parent=1 // loop_pre_header
      _
    $region3: #{audio_encoder_single_cls.1} parent=1 // loop_header
      %s10 = sphi 0, %s14
      %p11 = scmp.ge.s32.totalorder %s10, 4
      %s17 = sphi 0, %s29
      %s18 = sphi 0, %s25
      %s19 = sphi 0, %s17
      %s20 = sphi 0, %s18
      %s21 = sphi 0, %s19
      %s22 = sphi 0, %s20
      %s34 = sphi 0, %s36
      %s37 = sphi 0, %s34
      %s38 = sphi 0, %s37
      %s54 = sphi 0, %s38
      %s60 = sphi 0, %s62
      %s63 = sphi 0, %s60
      %s64 = sphi 0, %s63
      %s80 = sphi 0, %s64
    $region4: #{audio_encoder_single_cls.1} parent=1 // loop_header_branch
      %13 = sbr.rel (%p11) target = $region8
    $region5: #{audio_encoder_single_cls.1} parent=1 // loop_body
      %s15 = ssub.s32 %s10, 1
      %s16 = ssub.s32 %s10, 2
      %s23 = sadd.s32 1, %s18
      %p24 = scmp.ge.s32.totalorder %s23, 1
      %s25 = scalar_select %p24, 0, %s23
      %s26 = sadd.s32 1, %s17
      %s27 = scalar_select %p24, %s26, %s17
      %p28 = scmp.ge.s32.totalorder %s27, 2
      %s29 = scalar_select %p28, 0, %s27
      %s30 = ssub.s32 %s17, %s29
      %s31 = ssub.s32 %s18, %s25
      %s32 = sor.u32 %s30, %s31
      %p33 = scmp.eq.s32.totalorder %s32, 0
      %s35 = sadd.s32 %s34, 1
      %s36 = scalar_select %p33, %s34, %s35
      %p39 = pneg %p33
      %p40 = scmp.eq.s32.totalorder %s10, 1
      %p41 = por %p39, %p40
      %p42 = scmp.ne.s32.totalorder %s34, %s37
      %p43 = scmp.eq.s32.totalorder %s10, 0
      %p44 = por %p42, %p43
      %p45 = scmp.ne.s32.totalorder %s34, %s37
      %p46 = scmp.eq.s32.totalorder %s15, 1
      %p47 = por %p45, %p46
      %p48 = scmp.ne.s32.totalorder %s37, %s38
      %p49 = scmp.eq.s32.totalorder %s15, 0
      %p50 = por %p48, %p49
      %p51 = scmp.ne.s32.totalorder %s37, %s38
      %p52 = scmp.eq.s32.totalorder %s16, 1
      %p53 = por %p51, %p52
      %p55 = scmp.ne.s32.totalorder %s38, %s54
      %p56 = scmp.eq.s32.totalorder %s16, 0
      %p57 = por %p55, %p56
      %s58 = ssub.s32 %s17, %s29
      %p59 = scmp.eq.s32.totalorder %s58, 0
      %s61 = sadd.s32 %s60, 1
      %s62 = scalar_select %p59, %s60, %s61
      %p65 = pneg %p59
      %p66 = scmp.eq.s32.totalorder %s10, 1
      %p67 = por %p65, %p66
      %p68 = scmp.ne.s32.totalorder %s60, %s63
      %p69 = scmp.eq.s32.totalorder %s10, 0
      %p70 = por %p68, %p69
      %p71 = scmp.ne.s32.totalorder %s60, %s63
      %p72 = scmp.eq.s32.totalorder %s15, 1
      %p73 = por %p71, %p72
      %p74 = scmp.ne.s32.totalorder %s63, %s64
      %p75 = scmp.eq.s32.totalorder %s15, 0
      %p76 = por %p74, %p75
      %p77 = scmp.ne.s32.totalorder %s63, %s64
      %p78 = scmp.eq.s32.totalorder %s16, 1
      %p79 = por %p77, %p78
      %p81 = scmp.ne.s32.totalorder %s64, %s80
      %p82 = scmp.eq.s32.totalorder %s16, 0
      %p83 = por %p81, %p82
      %p84 = scmp.le.s32.totalorder 1, %s10
      %p85 = scmp.lt.s32.totalorder %s10, 3
      %p86 = pnand %p84, %p85
      %p87 = pneg %p86
      // Predicated region
      $region9: #{audio_encoder_single_cls.1} parent=5 // pred_check
        _
      $region10: #{audio_encoder_single_cls.1} parent=5 // pred_check_branch
        %89 = sbr.rel (%p86) target = $region12
      $region11: #{audio_encoder_single_cls.1} parent=5 // pred_region
        %s90 = ssub.s32 %s10, 1
      $region12: #{audio_encoder_single_cls.1} parent=5 // pred_fallthru
        _
      %p91 = scmp.lt.s32.totalorder %s10, 2
      // Predicated region
      $region13: #{audio_encoder_single_cls.1} parent=5 // pred_check
        %p92 = pneg %p91
      $region14: #{audio_encoder_single_cls.1} parent=5 // pred_check_branch
        %94 = sbr.rel (%p92) target = $region16
      $region15: #{audio_encoder_single_cls.1} parent=5 // pred_region
        // Predicated region
        $region17: #{audio_encoder_single_cls.1} parent=15 // pred_check
          %p95 = pneg %p44
        $region18: #{audio_encoder_single_cls.1} parent=15 // pred_check_branch
          %97 = sbr.rel (%p95) target = $region20
        $region19: #{audio_encoder_single_cls.1} parent=15 // pred_region
          %s98 = sand.u32 %s34, 1
          %s99 = scalar_lea.sflag [#allocation3], %s98
          %s100 = sand.u32 %s34, 1
          %s101 = smul.addr %s100, 48
          %s102 = scalar_lea.vmem [#allocation2], %s101
          %s104 = ssub.s32 768, 768
          %105 = vsyncadd %s99, %s104
          %s106 = smul.addr %s18, 6
          %s107 = smul.addr %s17, 6
          %s108 = sadd.s32 %s106, %s107
          %s109 = smul.addr %s108, 128
          %s110 = scalar_lea.hbm %s0, %s109
          %s112 = sshll.u32 %s102, 4
          %s113 = int_to_ptr.vmem [resolvable:$true] %s112
          %115 = dma.hbm_to_vmem [thread:$0]  %s110, 768, %s113, %s99
        $region20: #{audio_encoder_single_cls.1} parent=15 // pred_fallthru
          _
      $region16: #{audio_encoder_single_cls.1} parent=5 // pred_fallthru
        _
      %p116 = scmp.le.s32.totalorder 1, %s10
      %p117 = scmp.lt.s32.totalorder %s10, 3
      %p118 = pnand %p116, %p117
      %p119 = pneg %p118
      // Predicated region
      $region21: #{audio_encoder_single_cls.1} parent=5 // pred_check
        _
      $region22: #{audio_encoder_single_cls.1} parent=5 // pred_check_branch
        %121 = sbr.rel (%p118) target = $region24
      $region23: #{audio_encoder_single_cls.1} parent=5 // pred_region
        %s122 = ssub.s32 %s10, 1
        %s123 = sand.u32 %s37, 1
        %s124 = scalar_lea.sflag [#allocation3], %s123
        %s125 = sand.u32 %s37, 1
        %s126 = smul.addr %s125, 48
        %s127 = scalar_lea.vmem [#allocation2], %s126
        // Predicated region
        $region25: #{audio_encoder_single_cls.1} parent=23 // pred_check
          %p128 = pneg %p50
        $region26: #{audio_encoder_single_cls.1} parent=23 // pred_check_branch
          %130 = sbr.rel (%p128) target = $region28
        $region27: #{audio_encoder_single_cls.1} parent=23 // pred_region
          %131 = dma.done %s124, 768
        $region28: #{audio_encoder_single_cls.1} parent=23 // pred_fallthru
          _
        %s132 = sand.u32 %s37, 1
        %s133 = scalar_lea.sflag [#allocation3], %s132
        %s134 = sand.u32 %s37, 1
        %s135 = smul.addr %s134, 48
        %s136 = scalar_lea.vmem [#allocation2], %s135
        %p137 = pneg %p50
        %p138 = pneg %p47
        %p139 = pneg %p76
        %p140 = pneg %p73
        %p141 = scmp.lt.s32.totalorder %s19, 1
        %s142 = scalar_select %p141, %s19, 1
        %s143 = smul.addr %s142, 6
        %s144 = scalar_lea.vmem %s1, %s143
        %p145 = scmp.lt.s32.totalorder %s19, 1
        %s146 = scalar_select %p145, %s19, 1
        %s147 = smul.addr %s146, 6
        %s148 = scalar_lea.vmem %s1, %s147
        %p149 = scmp.eq.s32.totalorder %s20, 0
        // Predicated region
        $region29: #{audio_encoder_single_cls.1} parent=23 // pred_check
          %p150 = pneg %p149
        $region30: #{audio_encoder_single_cls.1} parent=23 // pred_check_branch
          %152 = sbr.rel (%p150) target = $region32
        $region31: #{audio_encoder_single_cls.1} parent=23 // pred_region
          %v153 = vlaneseq
          %vm154 = vcmp.ge.s32.totalorder %v153, 0
          %vm155 = vcmp.lt.s32.totalorder %v153, 768
          %vm156 = vmand %vm154, %vm155
          %157 = vst.msk [vmem:[%s148] sm:$0x3f] %vm156, 0.0
        $region32: #{audio_encoder_single_cls.1} parent=23 // pred_fallthru
          _
        %v158 = vld [vmem:[%s127] sm:$0xff]
        %v159 = vld [vmem:[%s127 + $0x8] sm:$0xff]
        %v160 = vld [vmem:[%s127 + $0x10] sm:$0xff]
        %v161 = vld [vmem:[%s127 + $0x18] sm:$0xff]
        %v162 = vld [vmem:[%s127 + $0x20] sm:$0xff]
        %v163 = vld [vmem:[%s127 + $0x28] sm:$0xff]
        %v164 = vld [vmem:[%s148] sm:$0x3f]
        %v165 = vrot.slane %v158, 4
        %v166 = vadd.f32 %v158, %v165
        %v167 = vrot.slane %v166, 2
        %v168 = vadd.f32 %v166, %v167
        %v169 = vrot.slane %v168, 1
        %v170 = vadd.f32 %v168, %v169
        %v171 = vrot.slane %v159, 4
        %v172 = vadd.f32 %v159, %v171
        %v173 = vrot.slane %v172, 2
        %v174 = vadd.f32 %v172, %v173
        %v175 = vrot.slane %v174, 1
        %v176 = vadd.f32 %v174, %v175
        %v177 = vrot.slane %v160, 4
        %v178 = vadd.f32 %v160, %v177
        %v179 = vrot.slane %v178, 2
        %v180 = vadd.f32 %v178, %v179
        %v181 = vrot.slane %v180, 1
        %v182 = vadd.f32 %v180, %v181
        %v183 = vrot.slane %v161, 4
        %v184 = vadd.f32 %v161, %v183
        %v185 = vrot.slane %v184, 2
        %v186 = vadd.f32 %v184, %v185
        %v187 = vrot.slane %v186, 1
        %v188 = vadd.f32 %v186, %v187
        %v189 = vrot.slane %v162, 4
        %v190 = vadd.f32 %v162, %v189
        %v191 = vrot.slane %v190, 2
        %v192 = vadd.f32 %v190, %v191
        %v193 = vrot.slane %v192, 1
        %v194 = vadd.f32 %v192, %v193
        %v195 = vrot.slane %v163, 4
        %v196 = vadd.f32 %v163, %v195
        %v197 = vrot.slane %v196, 2
        %v198 = vadd.f32 %v196, %v197
        %v199 = vrot.slane %v198, 1
        %v200 = vadd.f32 %v198, %v199
        %v207 = vcombine.low %v170, %v176
        %v208 = vcombine.low %v182, %v188
        %v209 = vcombine.low %v194, %v200
        %v211 = vunpack.c.l.s4 1966171168
        %v212 = vunpack.c.0.s8 %v211
        %v213 = vlaneseq
        %v214 = vshrl.u32 %v213, 7
        %v215 = vsub.s32 %v212, %v214
        %v216 = vrot.slane %v207, %v215
        %v218 = vunpack.c.l.s4 1966171168
        %v219 = vunpack.c.0.s8 %v218
        %v220 = vlaneseq
        %v221 = vshrl.u32 %v220, 7
        %v222 = vsub.s32 %v219, %v221
        %v223 = vrot.slane %v208, %v222
        %v225 = vunpack.c.l.s4 1966171168
        %v226 = vunpack.c.0.s8 %v225
        %v227 = vlaneseq
        %v228 = vshrl.u32 %v227, 7
        %v229 = vsub.s32 %v226, %v228
        %v230 = vrot.slane %v209, %v229
        %v231 = vcombine.low %v216, %v223
        %v233 = vunpack.c.l.s4 1966171168
        %v234 = vunpack.c.0.s8 %v233
        %v235 = vlaneseq
        %v236 = vshrl.u32 %v235, 7
        %v237 = vsub.s32 %v234, %v236
        %v238 = vrot.slane %v231, %v237
        %v240 = vunpack.c.l.s4 1966171168
        %v241 = vunpack.c.0.s8 %v240
        %v242 = vlaneseq
        %v243 = vshrl.u32 %v242, 7
        %v244 = vsub.s32 %v241, %v243
        %v245 = vrot.slane %v230, %v244
        %v246 = vcombine.low %v238, %v245
        %v248 = vadd.f32 %v164, %v246
        %v249 = vlaneseq
        %vm250 = vcmp.ge.s32.totalorder %v249, 0
        %vm251 = vcmp.lt.s32.totalorder %v249, 768
        %vm252 = vmand %vm250, %vm251
        %253 = vst.msk [vmem:[%s148] sm:$0x3f] %vm252, %v248
        %p254 = scmp.lt.s32.totalorder %s19, 1
        %s255 = scalar_select %p254, %s19, 1
        %s256 = smul.addr %s255, 6
        %s257 = scalar_lea.vmem %s1, %s256
        // Predicated region
        $region33: #{audio_encoder_single_cls.1} parent=23 // pred_check
          %p258 = pneg %p73
        $region34: #{audio_encoder_single_cls.1} parent=23 // pred_check_branch
          %260 = sbr.rel (%p258) target = $region36
        $region35: #{audio_encoder_single_cls.1} parent=23 // pred_region
          _
        $region36: #{audio_encoder_single_cls.1} parent=23 // pred_fallthru
          _
      $region24: #{audio_encoder_single_cls.1} parent=5 // pred_fallthru
        _
      %p261 = scmp.le.s32.totalorder 2, %s10
      // Predicated region
      $region37: #{audio_encoder_single_cls.1} parent=5 // pred_check
        %p262 = pneg %p261
      $region38: #{audio_encoder_single_cls.1} parent=5 // pred_check_branch
        %264 = sbr.rel (%p262) target = $region40
      $region39: #{audio_encoder_single_cls.1} parent=5 // pred_region
        %s265 = ssub.s32 %s10, 2
        // Predicated region
        $region41: #{audio_encoder_single_cls.1} parent=39 // pred_check
          %p266 = pneg %p79
        $region42: #{audio_encoder_single_cls.1} parent=39 // pred_check_branch
          %268 = sbr.rel (%p266) target = $region44
        $region43: #{audio_encoder_single_cls.1} parent=39 // pred_region
          %p269 = scmp.lt.s32.totalorder %s21, 1
          %s270 = scalar_select %p269, %s21, 1
          %s271 = smul.addr %s270, 6
          %s272 = scalar_lea.vmem %s1, %s271
        $region44: #{audio_encoder_single_cls.1} parent=39 // pred_fallthru
          _
      $region40: #{audio_encoder_single_cls.1} parent=5 // pred_fallthru
        _
    $region6: #{audio_encoder_single_cls.1} parent=1 // loop_footer
      %s14 = sadd.s32 1, %s10
    $region7: #{audio_encoder_single_cls.1} parent=1 // loop_footer_branch
      %9 = sbr.rel target = $region3
    $region8: #{audio_encoder_single_cls.1} parent=1 // loop_exit
      _
    %273 = vsyncpa [#allocation3], 1
    %s274 = scalar_lea.sflag [#allocation3], 1
    %275 = vsyncpa %s274, 1

</llo_original>
